<compile_context>
chip_gen: v6e
topology: v6e:2x2x1
jax: 0.10.0
libtpu: 0.0.40
codegen_flags: <defaults>
</compile_context>

<pallas_src>
import math

import jax
import jax.numpy as jnp
from jax.experimental import pallas as pl
from jax.experimental.pallas import tpu as pltpu

INPUT_SIZE = 160
H1 = 256
H2 = 128
OUT = 1

# Per step at 4096 rows: f32 x tile 2.6 MB (x2 double-buffered) + <10 MB of
# f32/bf16 intermediates + 0.3 MB resident weights -- well under the 32 MiB
# scoped-VMEM limit requested below on v5e/v6e/v7x.
DEFAULT_TILE_B = 4096
_VMEM_LIMIT_BYTES = 32 * 1024 * 1024


def _mer_kernel(x_ref, w1_ref, b1_ref, w2_ref, b2_ref, w3_ref, b3_ref, o_ref):
    # x streams from HBM in its incoming dtype; cast to bf16 only at the MXU
    # input (no wrapper-side convert pass over x).
    x = x_ref[...].astype(jnp.bfloat16)

    # Layer 1: bf16 MXU matmul, f32 accumulation.
    h1 = jnp.dot(x, w1_ref[...], preferred_element_type=jnp.float32)
    # Bias + ReLU on packed bf16 vregs (halves VALU issues on bf16-VPU chips;
    # hidden under HBM/MXU on v5e).  b1 is cast in-kernel (2 vregs, free).
    b1 = b1_ref[...].astype(jnp.bfloat16)
    h1 = jnp.maximum(h1.astype(jnp.bfloat16) + b1, 0.0)

    # Layer 2: bf16 MXU matmul, f32 accumulation, f32 bias + ReLU (feeds the
    # f32 VPU reduction below).
    h2 = jnp.dot(h1, w2_ref[...], preferred_element_type=jnp.float32) + b2_ref[...]
    h2 = jnp.maximum(h2, 0.0)

    # Layer 3 (128 -> 1): VPU multiply + XLU lane reduction instead of a
    # degenerate N=1 MXU matmul; w3 is kept as a (1, 128) f32 row.
    y = jnp.sum(h2 * w3_ref[...], axis=-1, keepdims=True) + b3_ref[...]
    o_ref[...] = y.astype(o_ref.dtype)


def _round_up(n, m):
    return ((n + m - 1) // m) * m


def _choose_tile(batch, max_tile):
    """Even batch tiling; >=2 grid steps when feasible (v7x megacore)."""
    num_steps = pl.cdiv(batch, max_tile)
    if batch > 16:
        # Keep both v7x TensorCores busy; one extra step is noise on v5e/v6e.
        num_steps = max(num_steps, 2)
    tile = _round_up(pl.cdiv(batch, num_steps), 8)
    if tile >= batch:
        tile = batch  # single full-extent block (always a legal block shape)
    return tile


def mer_regressor_forward(x, params, max_tile_b=DEFAULT_TILE_B):
    """Forward pass. x: (B, ...) flattened to (B, INPUT_SIZE)."""
    w1, b1, w2, b2, w3, b3 = params

    # torch: x.flatten(start_dim=1)
    x2d = x.reshape(x.shape[0], -1)
    B = x2d.shape[0]
    assert x2d.shape[1] == INPUT_SIZE, x2d.shape

    # MXU weight operands in bf16 (tiny, VMEM-resident); biases / w3 row stay
    # f32 for the f32 epilogues and the VPU third layer.
    w1 = w1.astype(jnp.bfloat16)
    w2 = w2.astype(jnp.bfloat16)
    b1 = b1.astype(jnp.float32)
    b2 = b2.astype(jnp.float32)
    w3 = w3.astype(jnp.float32)
    b3 = b3.astype(jnp.float32)

    tile_b = _choose_tile(B, max_tile_b)
    grid = (pl.cdiv(B, tile_b),)

    x_bytes = x2d.dtype.itemsize
    cost = pl.CostEstimate(
        flops=2 * B * (INPUT_SIZE * H1 + H1 * H2 + H2),
        transcendentals=0,
        bytes_accessed=(B * INPUT_SIZE * x_bytes + B * OUT * 4
                        + INPUT_SIZE * H1 * 2 + H1 * H2 * 2
                        + (H1 + H2 + H2 + OUT) * 4),
    )

    out = pl.pallas_call(
        _mer_kernel,
        out_shape=jax.ShapeDtypeStruct((B, OUT), jnp.float32),
        grid=grid,
        in_specs=[
            pl.BlockSpec((tile_b, INPUT_SIZE), lambda i: (i, 0)),  # x: streamed
            pl.BlockSpec((INPUT_SIZE, H1), lambda i: (0, 0)),      # w1: resident
            pl.BlockSpec((1, H1), lambda i: (0, 0)),               # b1
            pl.BlockSpec((H1, H2), lambda i: (0, 0)),              # w2: resident
            pl.BlockSpec((1, H2), lambda i: (0, 0)),               # b2
            pl.BlockSpec((1, H2), lambda i: (0, 0)),               # w3 row
            pl.BlockSpec((1, OUT), lambda i: (0, 0)),              # b3
        ],
        out_specs=pl.BlockSpec((tile_b, OUT), lambda i: (i, 0)),
        compiler_params=pltpu.CompilerParams(
            dimension_semantics=("parallel",),
            vmem_limit_bytes=_VMEM_LIMIT_BYTES,
        ),
        cost_estimate=cost,
    )(x2d, w1, b1, w2, b2, w3, b3)

    return out


# ----------------------------- init (matches torch) -------------------------

def _kaiming_uniform_relu(key, fan_in, fan_out):
    # torch.nn.init.kaiming_uniform_(w, nonlinearity='relu'):
    # gain = sqrt(2), bound = gain * sqrt(3 / fan_in) = sqrt(6 / fan_in)
    bound = math.sqrt(6.0 / fan_in)
    return jax.random.uniform(key, (fan_in, fan_out), jnp.float32, -bound, bound)


def _xavier_uniform_row(key, fan_in, fan_out):
    # Stored as a (fan_out, fan_in) row for the VPU-reduction third layer.
    bound = math.sqrt(6.0 / (fan_in + fan_out))
    return jax.random.uniform(key, (fan_out, fan_in), jnp.float32, -bound, bound)


def _linear_bias(key, fan_in, fan_out):
    # nn.Linear default bias init: U(-1/sqrt(fan_in), 1/sqrt(fan_in))
    bound = 1.0 / math.sqrt(fan_in)
    return jax.random.uniform(key, (1, fan_out), jnp.float32, -bound, bound)


def init_params(key):
    k = jax.random.split(key, 6)
    w1 = _kaiming_uniform_relu(k[0], INPUT_SIZE, H1)        # (160, 256)
    b1 = _linear_bias(k[1], INPUT_SIZE, H1)                 # (1, 256)
    w2 = _kaiming_uniform_relu(k[2], H1, H2)                # (256, 128)
    b2 = _linear_bias(k[3], H1, H2)                         # (1, 128)
    w3 = _xavier_uniform_row(k[4], H2, OUT)                 # (1, 128) row
    b3 = _linear_bias(k[5], H2, OUT)                        # (1, 1)
    return (w1, b1, w2, b2, w3, b3)


# ----------------------------- reference ------------------------------------

def _reference(x, params):
    # Mirrors the kernel's dtype path (bf16 MXU inputs, f32 accumulation,
    # bf16 layer-1 bias+ReLU epilogue).
    w1, b1, w2, b2, w3, b3 = params
    h = x.reshape(x.shape[0], -1)
    h = jnp.dot(h.astype(jnp.bfloat16), w1.astype(jnp.bfloat16),
                preferred_element_type=jnp.float32)
    h = jnp.maximum(h.astype(jnp.bfloat16) + b1.astype(jnp.bfloat16), 0.0)
    h = jnp.dot(h, w2.astype(jnp.bfloat16), preferred_element_type=jnp.float32) + b2
    h = jnp.maximum(h, 0.0)
    return jnp.sum(h * w3, axis=-1, keepdims=True) + b3


if __name__ == "__main__":
    key = jax.random.PRNGKey(0)
    kx, kp = jax.random.split(key)
    params = init_params(kp)

    # batch=2, flattened feature size = 10*16 = 160 (exercises flatten(start_dim=1)
    # and the single full-extent-block path).
    x_small = jax.random.normal(kx, (2, 10, 16), jnp.float32)
    out_small = jax.block_until_ready(mer_regressor_forward(x_small, params))
    ref_small = _reference(x_small, params)
    assert out_small.shape == (2, 1), out_small.shape
    assert jnp.allclose(out_small, ref_small, atol=1e-2, rtol=1e-2), (out_small, ref_small)

    # batch=32 exercises the multi-step, double-buffered grid (tile_b=16, grid=(2,))
    # with VMEM-resident weights across steps.
    x_big = jax.random.normal(kx, (32, INPUT_SIZE), jnp.float32)
    out_big = jax.block_until_ready(mer_regressor_forward(x_big, params))
    ref_big = _reference(x_big, params)
    assert out_big.shape == (32, 1), out_big.shape
    assert jnp.allclose(out_big, ref_big, atol=1e-2, rtol=1e-2), (out_big, ref_big)

    print("KERNEL_OK")
</pallas_src>

<mosaic_0001>
module attributes {stable_mosaic.version = 11 : i64} {
  func.func @_mer_kernel(%arg0: i32, %arg1: memref<2x160xf32, #tpu.memory_space<vmem>>, %arg2: memref<160x256xbf16, #tpu.memory_space<vmem>>, %arg3: memref<1x256xf32, #tpu.memory_space<vmem>>, %arg4: memref<256x128xbf16, #tpu.memory_space<vmem>>, %arg5: memref<1x128xf32, #tpu.memory_space<vmem>>, %arg6: memref<1x128xf32, #tpu.memory_space<vmem>>, %arg7: memref<1x1xf32, #tpu.memory_space<vmem>>, %arg8: memref<2x1xf32, #tpu.memory_space<vmem>>) attributes {dimension_semantics = [#tpu.dimension_semantics<parallel>], iteration_bounds = array<i64: 1>, scalar_prefetch = 0 : i64, scratch_operands = 0 : i64, tpu.core_type = #tpu.core_type<tc>, window_params = [{transform_indices = @transform_0, window_bounds = array<i64: 2, 160>}, {pipeline_mode = #tpu.pipeline_mode<synchronous>, transform_indices = @transform_1, window_bounds = array<i64: 160, 256>}, {pipeline_mode = #tpu.pipeline_mode<synchronous>, transform_indices = @transform_2, window_bounds = array<i64: 1, 256>}, {pipeline_mode = #tpu.pipeline_mode<synchronous>, transform_indices = @transform_3, window_bounds = array<i64: 256, 128>}, {pipeline_mode = #tpu.pipeline_mode<synchronous>, transform_indices = @transform_4, window_bounds = array<i64: 1, 128>}, {pipeline_mode = #tpu.pipeline_mode<synchronous>, transform_indices = @transform_5, window_bounds = array<i64: 1, 128>}, {pipeline_mode = #tpu.pipeline_mode<synchronous>, transform_indices = @transform_6, window_bounds = array<i64: 1, 1>}, {transform_indices = @transform_7, window_bounds = array<i64: 2, 1>}]} {
    %c0 = arith.constant 0 : index
    %c0_0 = arith.constant 0 : index
    %0 = vector.load %arg1[%c0, %c0_0] : memref<2x160xf32, #tpu.memory_space<vmem>>, vector<2x160xf32>
    %1 = arith.truncf %0 : vector<2x160xf32> to vector<2x160xbf16>
    %c0_1 = arith.constant 0 : index
    %c0_2 = arith.constant 0 : index
    %2 = vector.load %arg2[%c0_1, %c0_2] : memref<160x256xbf16, #tpu.memory_space<vmem>>, vector<160x256xbf16>
    %cst = arith.constant dense<0.000000e+00> : vector<2x256xf32>
    %3 = tpu.matmul %1, %2, %cst {dimension_numbers = #tpu.dot_dimension_numbers<[1], [0], [0], [1], [0, 0, 1, 1], [], []>} : vector<2x160xbf16>, vector<160x256xbf16>, vector<2x256xf32> -> vector<2x256xf32>
    %c0_3 = arith.constant 0 : index
    %c0_4 = arith.constant 0 : index
    %4 = vector.load %arg3[%c0_3, %c0_4] : memref<1x256xf32, #tpu.memory_space<vmem>>, vector<1x256xf32>
    %5 = arith.truncf %4 : vector<1x256xf32> to vector<1x256xbf16>
    %6 = arith.truncf %3 : vector<2x256xf32> to vector<2x256xbf16>
    %7 = vector.broadcast %5 : vector<1x256xbf16> to vector<2x256xbf16>
    %8 = arith.addf %6, %7 : vector<2x256xbf16>
    %cst_5 = arith.constant 0.000000e+00 : bf16
    %9 = vector.broadcast %cst_5 : bf16 to vector<2x256xbf16>
    %10 = arith.maximumf %8, %9 : vector<2x256xbf16>
    %c0_6 = arith.constant 0 : index
    %c0_7 = arith.constant 0 : index
    %11 = vector.load %arg4[%c0_6, %c0_7] : memref<256x128xbf16, #tpu.memory_space<vmem>>, vector<256x128xbf16>
    %cst_8 = arith.constant dense<0.000000e+00> : vector<2x128xf32>
    %12 = tpu.matmul %10, %11, %cst_8 {dimension_numbers = #tpu.dot_dimension_numbers<[1], [0], [0], [1], [0, 0, 1, 1], [], []>} : vector<2x256xbf16>, vector<256x128xbf16>, vector<2x128xf32> -> vector<2x128xf32>
    %c0_9 = arith.constant 0 : index
    %c0_10 = arith.constant 0 : index
    %13 = vector.load %arg5[%c0_9, %c0_10] : memref<1x128xf32, #tpu.memory_space<vmem>>, vector<1x128xf32>
    %14 = vector.broadcast %13 : vector<1x128xf32> to vector<2x128xf32>
    %15 = arith.addf %12, %14 : vector<2x128xf32>
    %cst_11 = arith.constant 0.000000e+00 : f32
    %16 = vector.broadcast %cst_11 : f32 to vector<2x128xf32>
    %17 = arith.maximumf %15, %16 : vector<2x128xf32>
    %c0_12 = arith.constant 0 : index
    %c0_13 = arith.constant 0 : index
    %18 = vector.load %arg6[%c0_12, %c0_13] : memref<1x128xf32, #tpu.memory_space<vmem>>, vector<1x128xf32>
    %19 = vector.broadcast %18 : vector<1x128xf32> to vector<2x128xf32>
    %20 = arith.mulf %17, %19 : vector<2x128xf32>
    %cst_14 = arith.constant dense<0.000000e+00> : vector<2xf32>
    %21 = vector.multi_reduction <add>, %20, %cst_14 [1] : vector<2x128xf32> to vector<2xf32>
    %22 = vector.shape_cast %21 : vector<2xf32> to vector<2x1xf32>
    %c0_15 = arith.constant 0 : index
    %c0_16 = arith.constant 0 : index
    %23 = vector.load %arg7[%c0_15, %c0_16] : memref<1x1xf32, #tpu.memory_space<vmem>>, vector<1x1xf32>
    %24 = vector.broadcast %23 : vector<1x1xf32> to vector<2x1xf32>
    %25 = arith.addf %22, %24 : vector<2x1xf32>
    %c0_17 = arith.constant 0 : index
    %c0_18 = arith.constant 0 : index
    %26 = vector.load %arg8[%c0_17, %c0_18] : memref<2x1xf32, #tpu.memory_space<vmem>>, vector<2x1xf32>
    tpu.vector_store %arg8[%c0_17, %c0_18], %25 {strides = array<i32>} : memref<2x1xf32, #tpu.memory_space<vmem>>, vector<2x1xf32>,
    return
  }
  func.func @transform_0(%arg0: i32) -> (i32, i32) {
    %c0_i32 = arith.constant 0 : i32
    %c0_i32_0 = arith.constant 0 : i32
    return %arg0, %c0_i32 : i32, i32
  }
  func.func @transform_1(%arg0: i32) -> (i32, i32) {
    %c0_i32 = arith.constant 0 : i32
    %c0_i32_0 = arith.constant 0 : i32
    %c0_i32_1 = arith.constant 0 : i32
    return %c0_i32, %c0_i32_0 : i32, i32
  }
  func.func @transform_2(%arg0: i32) -> (i32, i32) {
    %c0_i32 = arith.constant 0 : i32
    %c0_i32_0 = arith.constant 0 : i32
    %c0_i32_1 = arith.constant 0 : i32
    return %c0_i32, %c0_i32_0 : i32, i32
  }
  func.func @transform_3(%arg0: i32) -> (i32, i32) {
    %c0_i32 = arith.constant 0 : i32
    %c0_i32_0 = arith.constant 0 : i32
    %c0_i32_1 = arith.constant 0 : i32
    return %c0_i32, %c0_i32_0 : i32, i32
  }
  func.func @transform_4(%arg0: i32) -> (i32, i32) {
    %c0_i32 = arith.constant 0 : i32
    %c0_i32_0 = arith.constant 0 : i32
    %c0_i32_1 = arith.constant 0 : i32
    return %c0_i32, %c0_i32_0 : i32, i32
  }
  func.func @transform_5(%arg0: i32) -> (i32, i32) {
    %c0_i32 = arith.constant 0 : i32
    %c0_i32_0 = arith.constant 0 : i32
    %c0_i32_1 = arith.constant 0 : i32
    return %c0_i32, %c0_i32_0 : i32, i32
  }
  func.func @transform_6(%arg0: i32) -> (i32, i32) {
    %c0_i32 = arith.constant 0 : i32
    %c0_i32_0 = arith.constant 0 : i32
    %c0_i32_1 = arith.constant 0 : i32
    return %c0_i32, %c0_i32_0 : i32, i32
  }
  func.func @transform_7(%arg0: i32) -> (i32, i32) {
    %c0_i32 = arith.constant 0 : i32
    %c0_i32_0 = arith.constant 0 : i32
    return %arg0, %c0_i32 : i32, i32
  }
}

</mosaic_0001>

<llo_original>
// kernel: tpu_custom_call.1
$region0: #{tpu_custom_call.1}
  #allocation0 [shape = 'u32[]', space=smem, size = 0x4, offset = 0x4, fixed_abs, tag = 'smem constant byte address 0x4 - core index']
  #allocation1 [shape = 'u32[144,128]{1,0:T(1,128)}', space=vmem, size = 0x12000, scoped, tag = 'internal scratch']
  #allocation2 [shape = 'f32[1,1]{1,0:T(1,128)S(1)}', space=vmem, size = 0x200, scoped, tag = 'scoped memory for tpu_custom_call.1']
  %s0 = inlined_call_operand.hbm [shape: f32[2,160], index: 0, kind: input, shape index: {}]
  %s1 = inlined_call_operand.hbm [shape: bf16[160,256], index: 1, kind: input, shape index: {}]
  %s2 = inlined_call_operand.vmem [shape: f32[1,256], index: 2, kind: input, shape index: {}]
  %s3 = inlined_call_operand.hbm [shape: bf16[256,128], index: 3, kind: input, shape index: {}]
  %s4 = inlined_call_operand.vmem [shape: f32[1,128], index: 4, kind: input, shape index: {}]
  %s5 = inlined_call_operand.vmem [shape: f32[1,128], index: 5, kind: input, shape index: {}]
  %s6 = inlined_call_operand.<no memory space> [shape: f32[1,1], index: 6, kind: input, shape index: {}]
  %s7 = inlined_call_operand.vmem [shape: f32[2,1], index: 7, kind: output, shape index: {}]
  %s8 = sld [smem:[#allocation0]]
  $region50: #{tpu_custom_call.1} parent=0
    _
  %s10 = ssub.s32 1, %s8
  %s11 = scalar_select 0, %s10, %s8
  %v12 = vstv %s6
  %13 = vst [vmem:[#allocation2] sm:$0x1] %v12
  $region1: #{tpu_custom_call.1} parent=0
    #allocation3 [shape = 'u8[2048]{0}', space=vmem, size = 0x800, scoped, tag = 'input window, operand 0, single buffered']
    #allocation4 [shape = 's32[1]{0}', space=sflag, size = 0x4, scoped, tag = 'scoped memory for tpu_custom_call.1']
    #allocation5 [shape = 'u8[81920]{0}', space=vmem, size = 0x14000, scoped, tag = 'input window, operand 1, single buffered']
    #allocation6 [shape = 's32[1]{0}', space=sflag, size = 0x4, scoped, tag = 'scoped memory for tpu_custom_call.1']
    #allocation7 [shape = 'u8[65536]{0}', space=vmem, size = 0x10000, scoped, tag = 'input window, operand 3, single buffered']
    %14 = vsyncpa [#allocation4], 0
    %15 = vsyncpa [#allocation6], 0
    // Predicated region
    $region2: #{tpu_custom_call.1} parent=1 // pred_check
      _
    $region3: #{tpu_custom_call.1} parent=1 // pred_check_branch
      %17 = sbr.rel (0) target = $region5
    $region4: #{tpu_custom_call.1} parent=1 // pred_region
      %s19 = ssub.s32 64, 64
      %20 = vsyncadd [#allocation4], %s19
      %s22 = sshll.u32 [#allocation3], 4
      %s23 = int_to_ptr.vmem [resolvable:$true] %s22
      %25 = dma.hbm_to_vmem [thread:$0]  %s0, 64, %s23, [#allocation4]
    $region5: #{tpu_custom_call.1} parent=1 // pred_fallthru
      _
    // Predicated region
    $region6: #{tpu_custom_call.1} parent=1 // pred_check
      _
    $region7: #{tpu_custom_call.1} parent=1 // pred_check_branch
      %27 = sbr.rel (0) target = $region9
    $region8: #{tpu_custom_call.1} parent=1 // pred_region
      %s29 = ssub.s32 2560, 2560
      %30 = vsyncadd [#allocation6], %s29
      %s31 = sshll.u32 [#allocation5], 4
      %s32 = int_to_ptr.vmem [resolvable:$true] %s31
      %37 = dma.hbm_to_vmem [thread:$0]  %s1, 2560, %s32, [#allocation6], 128, 128, 8
    $region9: #{tpu_custom_call.1} parent=1 // pred_fallthru
      _
    // Predicated region
    $region10: #{tpu_custom_call.1} parent=1 // pred_check
      _
    $region11: #{tpu_custom_call.1} parent=1 // pred_check_branch
      %39 = sbr.rel (0) target = $region13
    $region12: #{tpu_custom_call.1} parent=1 // pred_region
      _
    $region13: #{tpu_custom_call.1} parent=1 // pred_fallthru
      _
    // Predicated region
    $region14: #{tpu_custom_call.1} parent=1 // pred_check
      _
    $region15: #{tpu_custom_call.1} parent=1 // pred_check_branch
      %41 = sbr.rel (0) target = $region17
    $region16: #{tpu_custom_call.1} parent=1 // pred_region
      %s43 = ssub.s32 2048, 2048
      %44 = vsyncadd [#allocation6], %s43
      %s45 = sshll.u32 [#allocation7], 4
      %s46 = int_to_ptr.vmem [resolvable:$true] %s45
      %51 = dma.hbm_to_vmem [thread:$0]  %s3, 2048, %s46, [#allocation6], 64, 64, 4
    $region17: #{tpu_custom_call.1} parent=1 // pred_fallthru
      _
    // Predicated region
    $region18: #{tpu_custom_call.1} parent=1 // pred_check
      _
    $region19: #{tpu_custom_call.1} parent=1 // pred_check_branch
      %53 = sbr.rel (0) target = $region21
    $region20: #{tpu_custom_call.1} parent=1 // pred_region
      _
    $region21: #{tpu_custom_call.1} parent=1 // pred_fallthru
      _
    // Predicated region
    $region22: #{tpu_custom_call.1} parent=1 // pred_check
      _
    $region23: #{tpu_custom_call.1} parent=1 // pred_check_branch
      %55 = sbr.rel (0) target = $region25
    $region24: #{tpu_custom_call.1} parent=1 // pred_region
      _
    $region25: #{tpu_custom_call.1} parent=1 // pred_fallthru
      _
    // Predicated region
    $region26: #{tpu_custom_call.1} parent=1 // pred_check
      _
    $region27: #{tpu_custom_call.1} parent=1 // pred_check_branch
      %57 = sbr.rel (0) target = $region29
    $region28: #{tpu_custom_call.1} parent=1 // pred_region
      _
    $region29: #{tpu_custom_call.1} parent=1 // pred_fallthru
      _
    // Predicated region
    $region30: #{tpu_custom_call.1} parent=1 // pred_check
      _
    $region31: #{tpu_custom_call.1} parent=1 // pred_check_branch
      %59 = sbr.rel (0) target = $region33
    $region32: #{tpu_custom_call.1} parent=1 // pred_region
      %60 = dma.done [#allocation4], 64
    $region33: #{tpu_custom_call.1} parent=1 // pred_fallthru
      _
    // Predicated region
    $region34: #{tpu_custom_call.1} parent=1 // pred_check
      _
    $region35: #{tpu_custom_call.1} parent=1 // pred_check_branch
      %62 = sbr.rel (0) target = $region37
    $region36: #{tpu_custom_call.1} parent=1 // pred_region
      %63 = dma.done [#allocation6], 2560
    $region37: #{tpu_custom_call.1} parent=1 // pred_fallthru
      _
    // Predicated region
    $region38: #{tpu_custom_call.1} parent=1 // pred_check
      _
    $region39: #{tpu_custom_call.1} parent=1 // pred_check_branch
      %65 = sbr.rel (0) target = $region41
    $region40: #{tpu_custom_call.1} parent=1 // pred_region
      %66 = dma.done [#allocation6], 2048
    $region41: #{tpu_custom_call.1} parent=1 // pred_fallthru
      _
    %v68 = vld [vmem:[#allocation3] sm:$0xf]
    %v71 = vunpack.c.l.s4 1983009808
    %v72 = vunpack.c.0.s8 %v71
    %v73 = vlaneseq
    %v74 = vshrl.u32 %v73, 7
    %v75 = vsub.s32 %v72, %v74
    %v76 = vrot.slane %v68, %v75
    %v77 = vcombine.high %v76, %v76
    %v80 = vpack.c.bf16 %v76, %v76
    %v81 = vpack.c.bf16 %v77, %v77
    %v82 = vld [vmem:[#allocation5] sm:$0xff]
    %v83 = vld [vmem:[#allocation5 + $0x8] sm:$0xff]
    %v84 = vld [vmem:[#allocation5 + $0x10] sm:$0xff]
    %v85 = vld [vmem:[#allocation5 + $0x18] sm:$0xff]
    %v86 = vld [vmem:[#allocation5 + $0x20] sm:$0xff]
    %v87 = vld [vmem:[#allocation5 + $0x28] sm:$0xff]
    %v88 = vld [vmem:[#allocation5 + $0x30] sm:$0xff]
    %v89 = vld [vmem:[#allocation5 + $0x38] sm:$0xff]
    %v90 = vld [vmem:[#allocation5 + $0x40] sm:$0xff]
    %v91 = vld [vmem:[#allocation5 + $0x48] sm:$0xff]
    %v92 = vld [vmem:[#allocation5 + $0x50] sm:$0xff]
    %v93 = vld [vmem:[#allocation5 + $0x58] sm:$0xff]
    %v94 = vld [vmem:[#allocation5 + $0x60] sm:$0xff]
    %v95 = vld [vmem:[#allocation5 + $0x68] sm:$0xff]
    %v96 = vld [vmem:[#allocation5 + $0x70] sm:$0xff]
    %v97 = vld [vmem:[#allocation5 + $0x78] sm:$0xff]
    %v98 = vld [vmem:[#allocation5 + $0x80] sm:$0xff]
    %v99 = vld [vmem:[#allocation5 + $0x88] sm:$0xff]
    %v100 = vld [vmem:[#allocation5 + $0x90] sm:$0xff]
    %v101 = vld [vmem:[#allocation5 + $0x98] sm:$0xff]
    %v122 = vunpack.c.l.b16 %v82
    %v123 = vunpack.c.h.b16 %v82
    %v124 = vunpack.c.l.b16 %v83
    %v125 = vunpack.c.h.b16 %v83
    %v126 = vunpack.c.l.b16 %v84
    %v127 = vunpack.c.h.b16 %v84
    %v128 = vunpack.c.l.b16 %v85
    %v129 = vunpack.c.h.b16 %v85
    %v130 = vunpack.c.l.b16 %v86
    %v131 = vunpack.c.h.b16 %v86
    %v132 = vunpack.c.l.b16 %v87
    %v133 = vunpack.c.h.b16 %v87
    %v134 = vunpack.c.l.b16 %v88
    %v135 = vunpack.c.h.b16 %v88
    %v136 = vunpack.c.l.b16 %v89
    %v137 = vunpack.c.h.b16 %v89
    %v138 = vunpack.c.l.b16 %v90
    %v139 = vunpack.c.h.b16 %v90
    %v140 = vunpack.c.l.b16 %v91
    %v141 = vunpack.c.h.b16 %v91
    %v142 = vunpack.c.l.b16 %v92
    %v143 = vunpack.c.h.b16 %v92
    %v144 = vunpack.c.l.b16 %v93
    %v145 = vunpack.c.h.b16 %v93
    %v146 = vunpack.c.l.b16 %v94
    %v147 = vunpack.c.h.b16 %v94
    %v148 = vunpack.c.l.b16 %v95
    %v149 = vunpack.c.h.b16 %v95
    %v150 = vunpack.c.l.b16 %v96
    %v151 = vunpack.c.h.b16 %v96
    %v152 = vunpack.c.l.b16 %v97
    %v153 = vunpack.c.h.b16 %v97
    %v154 = vunpack.c.l.b16 %v98
    %v155 = vunpack.c.h.b16 %v98
    %v156 = vunpack.c.l.b16 %v99
    %v157 = vunpack.c.h.b16 %v99
    %v158 = vunpack.c.l.b16 %v100
    %v159 = vunpack.c.h.b16 %v100
    %v160 = vunpack.c.l.b16 %v101
    %v161 = vunpack.c.h.b16 %v101
    %v162 = vpack.c.b16 %v124, %v122
    %v163 = vpack.c.b16 %v125, %v123
    %v164 = vpack.c.b16 %v128, %v126
    %v165 = vpack.c.b16 %v129, %v127
    %v166 = vpack.c.b16 %v132, %v130
    %v167 = vpack.c.b16 %v133, %v131
    %v168 = vpack.c.b16 %v136, %v134
    %v169 = vpack.c.b16 %v137, %v135
    %v170 = vpack.c.b16 %v140, %v138
    %v171 = vpack.c.b16 %v141, %v139
    %v172 = vpack.c.b16 %v144, %v142
    %v173 = vpack.c.b16 %v145, %v143
    %v174 = vpack.c.b16 %v148, %v146
    %v175 = vpack.c.b16 %v149, %v147
    %v176 = vpack.c.b16 %v152, %v150
    %v177 = vpack.c.b16 %v153, %v151
    %v178 = vpack.c.b16 %v156, %v154
    %v179 = vpack.c.b16 %v157, %v155
    %v180 = vpack.c.b16 %v160, %v158
    %v181 = vpack.c.b16 %v161, %v159
    %vm202 = vcmask 261120
    %v204 = vsel %vm202, %v81, 0
    %206 = vmatprep.subr.bf16.mxu0 %v177
    %207 = vmatpush1.bf16.msra.mxu0 %v176
    %208 = vmatprep.subr.bf16.mxu0 %v175
    %209 = vmatpush1.bf16.msra.mxu0 %v174
    %210 = vmatprep.subr.bf16.mxu0 %v173
    %211 = vmatpush1.bf16.msra.mxu0 %v172
    %212 = vmatprep.subr.bf16.mxu0 %v171
    %213 = vmatpush1.bf16.msra.mxu0 %v170
    %214 = vmatprep.subr.bf16.mxu0 %v169
    %215 = vmatpush1.bf16.msra.mxu0 %v168
    %216 = vmatprep.subr.bf16.mxu0 %v167
    %217 = vmatpush1.bf16.msra.mxu0 %v166
    %218 = vmatprep.subr.bf16.mxu0 %v165
    %219 = vmatpush1.bf16.msra.mxu0 %v164
    %220 = vmatprep.subr.bf16.mxu0 %v163
    %221 = vmatpush1.bf16.msra.mxu0 %v162
    %222 = vmatprep.subr.bf16.mxu0 0
    %223 = vmatpush2.bf16.msra.mxu0 0
    %224 = vmatprep.subr.bf16.mxu0 0
    %225 = vmatpush2.bf16.msra.mxu0 0
    %226 = vmatprep.subr.bf16.mxu0 0
    %227 = vmatpush2.bf16.msra.mxu0 0
    %228 = vmatprep.subr.bf16.mxu0 0
    %229 = vmatpush2.bf16.msra.mxu0 0
    %230 = vmatprep.subr.bf16.mxu0 0
    %231 = vmatpush2.bf16.msra.mxu0 0
    %232 = vmatprep.subr.bf16.mxu0 0
    %233 = vmatpush2.bf16.msra.mxu0 0
    %234 = vmatprep.subr.bf16.mxu0 %v181
    %235 = vmatpush2.bf16.msra.mxu0 %v180
    %236 = vmatprep.subr.bf16.mxu0 %v179
    %237 = vmatpush2.bf16.msra.mxu0 %v178
    %238 = vmatprep.mubr.bf16.mxu0 %v204
    %239 = vmatmul.mubr.bf16.gmra.mxu0 %v80
    %v240 = vpop.f32.mrf.mxu0
    %v241 = vadd.f32 0.0, %v240
    %v242 = vpop.f32.mrf.mxu0
    %v243 = vadd.f32 0.0, %v242
    %v244 = vpop.f32.mrf.mxu0
    %v245 = vpop.f32.mrf.mxu0
    %246 = vdwg.mxu0
    %v247 = vld [vmem:[%s2] sm:$0x3]
    %v249 = vlaneseq
    %v250 = vshrl.u32 %v249, 7
    %v251 = vsub.s32 0, %v250
    %v252 = vrot.slane %v247, %v251
    %v253 = vlaneseq
    %v254 = vshrl.u32 %v253, 7
    %v255 = vsub.s32 1, %v254
    %v256 = vrot.slane %v247, %v255
    %v259 = vpack.c.bf16 %v252, %v252
    %v260 = vpack.c.bf16 %v256, %v256
    %v261 = vpack.c.bf16 %v241, %v241
    %v262 = vpack.c.bf16 %v243, %v243
    %v264 = vpack.i.b16 %v259, %v259
    %v266 = vlaneseq
    %v267 = vshrl.u32 %v266, 7
    %v268 = vsub.s32 0, %v267
    %v269 = vrot.slane %v264, %v268
    %v271 = vpack.i.b16 %v260, %v260
    %v273 = vlaneseq
    %v274 = vshrl.u32 %v273, 7
    %v275 = vsub.s32 0, %v274
    %v276 = vrot.slane %v271, %v275
    %v277 = vadd.bf16 %v261, %v269
    %v278 = vadd.bf16 %v262, %v276
    %v279 = vmax.bf16 %v277, 0
    %v280 = vmax.bf16 %v278, 0
    %v281 = vld [vmem:[#allocation7] sm:$0xf]
    %v282 = vld [vmem:[#allocation7 + $0x4] sm:$0xf]
    %v283 = vld [vmem:[#allocation7 + $0x8] sm:$0xf]
    %v284 = vld [vmem:[#allocation7 + $0xc] sm:$0xf]
    %v285 = vld [vmem:[#allocation7 + $0x10] sm:$0xf]
    %v286 = vld [vmem:[#allocation7 + $0x14] sm:$0xf]
    %v287 = vld [vmem:[#allocation7 + $0x18] sm:$0xf]
    %v288 = vld [vmem:[#allocation7 + $0x1c] sm:$0xf]
    %v289 = vld [vmem:[#allocation7 + $0x20] sm:$0xf]
    %v290 = vld [vmem:[#allocation7 + $0x24] sm:$0xf]
    %v291 = vld [vmem:[#allocation7 + $0x28] sm:$0xf]
    %v292 = vld [vmem:[#allocation7 + $0x2c] sm:$0xf]
    %v293 = vld [vmem:[#allocation7 + $0x30] sm:$0xf]
    %v294 = vld [vmem:[#allocation7 + $0x34] sm:$0xf]
    %v295 = vld [vmem:[#allocation7 + $0x38] sm:$0xf]
    %v296 = vld [vmem:[#allocation7 + $0x3c] sm:$0xf]
    %v297 = vld [vmem:[#allocation7 + $0x40] sm:$0xf]
    %v298 = vld [vmem:[#allocation7 + $0x44] sm:$0xf]
    %v299 = vld [vmem:[#allocation7 + $0x48] sm:$0xf]
    %v300 = vld [vmem:[#allocation7 + $0x4c] sm:$0xf]
    %v301 = vld [vmem:[#allocation7 + $0x50] sm:$0xf]
    %v302 = vld [vmem:[#allocation7 + $0x54] sm:$0xf]
    %v303 = vld [vmem:[#allocation7 + $0x58] sm:$0xf]
    %v304 = vld [vmem:[#allocation7 + $0x5c] sm:$0xf]
    %v305 = vld [vmem:[#allocation7 + $0x60] sm:$0xf]
    %v306 = vld [vmem:[#allocation7 + $0x64] sm:$0xf]
    %v307 = vld [vmem:[#allocation7 + $0x68] sm:$0xf]
    %v308 = vld [vmem:[#allocation7 + $0x6c] sm:$0xf]
    %v309 = vld [vmem:[#allocation7 + $0x70] sm:$0xf]
    %v310 = vld [vmem:[#allocation7 + $0x74] sm:$0xf]
    %v311 = vld [vmem:[#allocation7 + $0x78] sm:$0xf]
    %v312 = vld [vmem:[#allocation7 + $0x7c] sm:$0xf]
    %v313 = vld [vmem:[%s4] sm:$0x1]
    %v315 = vlaneseq
    %v316 = vshrl.u32 %v315, 7
    %v317 = vsub.s32 0, %v316
    %v318 = vrot.slane %v313, %v317
    %v352 = vunpack.c.l.b16 %v281
    %v353 = vunpack.c.l.b16 %v282
    %v354 = vunpack.c.l.b16 %v283
    %v355 = vunpack.c.l.b16 %v284
    %v356 = vunpack.c.l.b16 %v285
    %v357 = vunpack.c.l.b16 %v286
    %v358 = vunpack.c.l.b16 %v287
    %v359 = vunpack.c.l.b16 %v288
    %v360 = vunpack.c.l.b16 %v289
    %v361 = vunpack.c.l.b16 %v290
    %v362 = vunpack.c.l.b16 %v291
    %v363 = vunpack.c.l.b16 %v292
    %v364 = vunpack.c.l.b16 %v293
    %v365 = vunpack.c.l.b16 %v294
    %v366 = vunpack.c.l.b16 %v295
    %v367 = vunpack.c.l.b16 %v296
    %v368 = vunpack.c.l.b16 %v297
    %v369 = vunpack.c.l.b16 %v298
    %v370 = vunpack.c.l.b16 %v299
    %v371 = vunpack.c.l.b16 %v300
    %v372 = vunpack.c.l.b16 %v301
    %v373 = vunpack.c.l.b16 %v302
    %v374 = vunpack.c.l.b16 %v303
    %v375 = vunpack.c.l.b16 %v304
    %v376 = vunpack.c.l.b16 %v305
    %v377 = vunpack.c.l.b16 %v306
    %v378 = vunpack.c.l.b16 %v307
    %v379 = vunpack.c.l.b16 %v308
    %v380 = vunpack.c.l.b16 %v309
    %v381 = vunpack.c.l.b16 %v310
    %v382 = vunpack.c.l.b16 %v311
    %v383 = vunpack.c.l.b16 %v312
    %v384 = vpack.c.b16 %v353, %v352
    %v385 = vpack.c.b16 %v355, %v354
    %v386 = vpack.c.b16 %v357, %v356
    %v387 = vpack.c.b16 %v359, %v358
    %v388 = vpack.c.b16 %v361, %v360
    %v389 = vpack.c.b16 %v363, %v362
    %v390 = vpack.c.b16 %v365, %v364
    %v391 = vpack.c.b16 %v367, %v366
    %v392 = vpack.c.b16 %v369, %v368
    %v393 = vpack.c.b16 %v371, %v370
    %v394 = vpack.c.b16 %v373, %v372
    %v395 = vpack.c.b16 %v375, %v374
    %v396 = vpack.c.b16 %v377, %v376
    %v397 = vpack.c.b16 %v379, %v378
    %v398 = vpack.c.b16 %v381, %v380
    %v399 = vpack.c.b16 %v383, %v382
    %416 = vmatprep.subr.bf16.mxu0 0
    %417 = vmatpush1.bf16.msra.mxu0 %v391
    %418 = vmatprep.subr.bf16.mxu0 0
    %419 = vmatpush1.bf16.msra.mxu0 %v390
    %420 = vmatprep.subr.bf16.mxu0 0
    %421 = vmatpush1.bf16.msra.mxu0 %v389
    %422 = vmatprep.subr.bf16.mxu0 0
    %423 = vmatpush1.bf16.msra.mxu0 %v388
    %424 = vmatprep.subr.bf16.mxu0 0
    %425 = vmatpush1.bf16.msra.mxu0 %v387
    %426 = vmatprep.subr.bf16.mxu0 0
    %427 = vmatpush1.bf16.msra.mxu0 %v386
    %428 = vmatprep.subr.bf16.mxu0 0
    %429 = vmatpush1.bf16.msra.mxu0 %v385
    %430 = vmatprep.subr.bf16.mxu0 0
    %431 = vmatpush1.bf16.msra.mxu0 %v384
    %432 = vmatprep.subr.bf16.mxu0 0
    %433 = vmatpush2.bf16.msra.mxu0 %v399
    %434 = vmatprep.subr.bf16.mxu0 0
    %435 = vmatpush2.bf16.msra.mxu0 %v398
    %436 = vmatprep.subr.bf16.mxu0 0
    %437 = vmatpush2.bf16.msra.mxu0 %v397
    %438 = vmatprep.subr.bf16.mxu0 0
    %439 = vmatpush2.bf16.msra.mxu0 %v396
    %440 = vmatprep.subr.bf16.mxu0 0
    %441 = vmatpush2.bf16.msra.mxu0 %v395
    %442 = vmatprep.subr.bf16.mxu0 0
    %443 = vmatpush2.bf16.msra.mxu0 %v394
    %444 = vmatprep.subr.bf16.mxu0 0
    %445 = vmatpush2.bf16.msra.mxu0 %v393
    %446 = vmatprep.subr.bf16.mxu0 0
    %447 = vmatpush2.bf16.msra.mxu0 %v392
    %448 = vmatprep.mubr.bf16.mxu0 %v280
    %449 = vmatmul.mubr.bf16.gmra.mxu0 %v279
    %v450 = vpop.f32.mrf.mxu0
    %v451 = vadd.f32 %v318, %v450
    %v452 = vpop.f32.mrf.mxu0
    %v453 = vpop.f32.mrf.mxu0
    %v454 = vpop.f32.mrf.mxu0
    %455 = vdwg.mxu0
    %v456 = vmax.f32 %v451, 0.0
    %v457 = vld [vmem:[%s5] sm:$0x1]
    %v459 = vlaneseq
    %v460 = vshrl.u32 %v459, 7
    %v461 = vsub.s32 0, %v460
    %v462 = vrot.slane %v457, %v461
    %v464 = vmul.f32 %v456, %v462
    %vm465 = vcmask 1041408
    %v466 = vsel %vm465, %v464, 0.0
    %467 = vadd.xlane.f32.xlu0 %v466
    %v468 = vpop.xlane.xlu0 %467
    %v469 = vld [vmem:[#allocation2] sm:$0x1]
    %v471 = vlaneseq
    %v472 = vshrl.u32 %v471, 7
    %v473 = vsub.s32 0, %v472
    %v474 = vrot.slane %v469, %v473
    %v476 = vadd.f32 %v468, %v474
    %vm477 = vcmask 1024
    %478 = vst.msk [vmem:[%s7] sm:$0x3] %vm477, %v476
    // Predicated region
    $region42: #{tpu_custom_call.1} parent=1 // pred_check
      _
    $region43: #{tpu_custom_call.1} parent=1 // pred_check_branch
      %480 = sbr.rel (0) target = $region45
    $region44: #{tpu_custom_call.1} parent=1 // pred_region
      _
    $region45: #{tpu_custom_call.1} parent=1 // pred_fallthru
      _
    // Predicated region
    $region46: #{tpu_custom_call.1} parent=1 // pred_check
      _
    $region47: #{tpu_custom_call.1} parent=1 // pred_check_branch
      %482 = sbr.rel (0) target = $region49
    $region48: #{tpu_custom_call.1} parent=1 // pred_region
      _
    $region49: #{tpu_custom_call.1} parent=1 // pred_fallthru
      _
    %483 = vsyncpa [#allocation4], 1
    %484 = vsyncpa [#allocation6], 1

</llo_original>
